<compile_context>
chip_gen: v6e
topology: v6e:2x2x1
jax: 0.10.0
libtpu: 0.0.40
codegen_flags: <defaults>
</compile_context>

<pallas_src>
import functools

import jax
import jax.numpy as jnp
from jax.experimental import pallas as pl
from jax.experimental.pallas import tpu as pltpu

D_IN, D_H, D_OUT = 64, 128, 2
D_OUT_PAD = 128  # final matmul computed with 128 output lanes (MXU-friendly); only 2 stored


def _round_up(n, m):
    return (n + m - 1) // m * m


def mlp_kernel(x_ref, w1_ref, w23_ref, b_ref, o_ref):
    # Packed biases: [b1 | b2 | b3_pad]; static, lane-aligned slices.
    b1 = b_ref[:, 0:D_H]
    b2 = b_ref[:, D_H:2 * D_H]
    b3 = b_ref[:, 2 * D_H:2 * D_H + D_OUT_PAD]

    x = x_ref[...]

    # Layer 1: Linear(64 -> 128) + ReLU   (f32 throughout -> matches fp32 PyTorch model)
    h1 = jnp.dot(x, w1_ref[...], preferred_element_type=jnp.float32) + b1
    h1 = jnp.maximum(h1, 0.0)

    # Layer 2: Linear(128 -> 128) + Sigmoid
    h2 = jnp.dot(h1, w23_ref[:, 0:D_H], preferred_element_type=jnp.float32) + b2
    h2 = jax.nn.sigmoid(h2)

    # Layer 3: Linear(128 -> 2). Computed at 128 output lanes (w3/b3 zero-padded), but
    # only the 2 real columns are written back so HBM writeback stays 8 B per row.
    out = jnp.dot(h2, w23_ref[:, D_H:D_H + D_OUT_PAD],
                  preferred_element_type=jnp.float32) + b3
    o_ref[...] = out[:, :D_OUT].astype(o_ref.dtype)


def prepare_params(params):
    """One-time packing of the three Linear layers into the kernel's operand layout."""
    w1, b1, w2, b2, w3, b3 = params
    w3_pad = jnp.zeros((D_H, D_OUT_PAD), jnp.float32).at[:, :D_OUT].set(w3)
    w23 = jnp.concatenate([w2, w3_pad], axis=1)                       # (128, 256) f32
    b3_pad = jnp.zeros((1, D_OUT_PAD), jnp.float32).at[:, :D_OUT].set(b3)
    b_all = jnp.concatenate([b1, b2, b3_pad], axis=1)                 # (1, 384)  f32
    return (w1.astype(jnp.float32), w23, b_all)


@functools.partial(jax.jit, static_argnames=("block_b",))
def mlp_forward(x, packed_params, *, block_b=2048):
    w1, w23, b_all = packed_params
    B = x.shape[0]

    # Tiling policy:
    #  * ~block_b rows per tile so the ~0.35 us/grid-step overhead is amortized,
    #  * >=2 tiles once B is large so v7x's two TensorCores both get work,
    #  * pad B only up to num_tiles * round_up(ceil(B/num_tiles), 8)  (300 -> 304).
    min_tiles = 2 if B > 512 else 1
    num_tiles = max(min_tiles, pl.cdiv(B, block_b))
    tb = _round_up(pl.cdiv(B, num_tiles), 8)
    b_pad = num_tiles * tb
    if b_pad != B:
        x = jnp.pad(x, ((0, b_pad - B), (0, 0)))

    flops = 2 * b_pad * (D_IN * D_H + D_H * D_H + D_H * D_OUT_PAD)
    bytes_accessed = (b_pad * D_IN * 4 + w1.size * 4 + w23.size * 4
                      + b_all.size * 4 + b_pad * D_OUT * 4)

    out = pl.pallas_call(
        mlp_kernel,
        out_shape=jax.ShapeDtypeStruct((b_pad, D_OUT), jnp.float32),
        grid_spec=pltpu.PrefetchScalarGridSpec(
            num_scalar_prefetch=0,
            grid=(num_tiles,),
            in_specs=[
                pl.BlockSpec((tb, D_IN), lambda i: (i, 0)),                # x: batch-tiled
                pl.BlockSpec((D_IN, D_H), lambda i: (0, 0)),               # w1 (resident)
                pl.BlockSpec((D_H, D_H + D_OUT_PAD), lambda i: (0, 0)),    # [w2 | w3_pad]
                pl.BlockSpec((1, 2 * D_H + D_OUT_PAD), lambda i: (0, 0)),  # [b1|b2|b3_pad]
            ],
            out_specs=pl.BlockSpec((tb, D_OUT), lambda i: (i, 0)),
        ),
        compiler_params=pltpu.CompilerParams(
            dimension_semantics=("parallel",),   # shard batch tiles across v7x's 2 TCs
        ),
        cost_estimate=pl.CostEstimate(
            flops=flops,
            transcendentals=b_pad * D_H,         # sigmoid
            bytes_accessed=bytes_accessed,
        ),
    )(x, w1, w23, b_all)

    return out[:B]


def init_params(key):
    """Deterministic init mirroring nn.Linear's U(-1/sqrt(fan_in), 1/sqrt(fan_in))."""
    dims = [(D_IN, D_H), (D_H, D_H), (D_H, D_OUT)]
    params = []
    for (fan_in, fan_out) in dims:
        key, kw, kb = jax.random.split(key, 3)
        bound = 1.0 / jnp.sqrt(fan_in)
        w = jax.random.uniform(kw, (fan_in, fan_out), jnp.float32, -bound, bound)
        b = jax.random.uniform(kb, (1, fan_out), jnp.float32, -bound, bound)
        params.extend([w, b])
    return tuple(params)


def reference_forward(x, params):
    """Full-precision f32 reference matching the PyTorch module."""
    w1, b1, w2, b2, w3, b3 = params
    hp = jax.lax.Precision.HIGHEST
    h = jnp.maximum(jnp.dot(x, w1, precision=hp) + b1, 0.0)
    h = jax.nn.sigmoid(jnp.dot(h, w2, precision=hp) + b2)
    return jnp.dot(h, w3, precision=hp) + b3


if __name__ == "__main__":
    key = jax.random.PRNGKey(0)
    kx, kp, kx2, kx3 = jax.random.split(key, 4)
    params = init_params(kp)
    packed = prepare_params(params)

    # Small deterministic example matching the module's expected input: [B, 64].
    B = 8
    x = jax.random.normal(kx, (B, D_IN), jnp.float32)
    out = jax.block_until_ready(mlp_forward(x, packed))
    assert out.shape == (B, D_OUT), out.shape
    assert jnp.allclose(out, reference_forward(x, params), atol=1e-2, rtol=1e-2), \
        "mismatch vs f32 reference"

    # Non-multiple batch: pads 300 -> 304 rows (not 512).
    B2 = 300
    x2 = jax.random.normal(kx2, (B2, D_IN), jnp.float32)
    out2 = jax.block_until_ready(mlp_forward(x2, packed))
    assert out2.shape == (B2, D_OUT), out2.shape
    assert jnp.allclose(out2, reference_forward(x2, params), atol=1e-2, rtol=1e-2), \
        "mismatch vs f32 reference (padded batch)"

    # Multi-tile path (grid >= 2 so v7x megacore sharding is exercised).
    B3 = 1040
    x3 = jax.random.normal(kx3, (B3, D_IN), jnp.float32)
    out3 = jax.block_until_ready(mlp_forward(x3, packed))
    assert out3.shape == (B3, D_OUT), out3.shape
    assert jnp.allclose(out3, reference_forward(x3, params), atol=1e-2, rtol=1e-2), \
        "mismatch vs f32 reference (multi-tile batch)"

    print("KERNEL_OK")
</pallas_src>

<mosaic_0001>
module attributes {stable_mosaic.version = 11 : i64} {
  func.func @mlp_kernel(%arg0: i32, %arg1: memref<8x64xf32, #tpu.memory_space<vmem>>, %arg2: memref<64x128xf32, #tpu.memory_space<vmem>>, %arg3: memref<128x256xf32, #tpu.memory_space<vmem>>, %arg4: memref<1x384xf32, #tpu.memory_space<vmem>>, %arg5: memref<8x2xf32, #tpu.memory_space<vmem>>) attributes {dimension_semantics = [#tpu.dimension_semantics<parallel>], iteration_bounds = array<i64: 1>, scalar_prefetch = 0 : i64, scratch_operands = 0 : i64, tpu.core_type = #tpu.core_type<tc>, window_params = [{transform_indices = @transform_0, window_bounds = array<i64: 8, 64>}, {pipeline_mode = #tpu.pipeline_mode<synchronous>, transform_indices = @transform_1, window_bounds = array<i64: 64, 128>}, {pipeline_mode = #tpu.pipeline_mode<synchronous>, transform_indices = @transform_2, window_bounds = array<i64: 128, 256>}, {pipeline_mode = #tpu.pipeline_mode<synchronous>, transform_indices = @transform_3, window_bounds = array<i64: 1, 384>}, {transform_indices = @transform_4, window_bounds = array<i64: 8, 2>}]} {
    %c0 = arith.constant 0 : index
    %c0_0 = arith.constant 0 : index
    %0 = vector.load %arg4[%c0, %c0_0] : memref<1x384xf32, #tpu.memory_space<vmem>>, vector<1x128xf32>
    %c0_1 = arith.constant 0 : index
    %c128 = arith.constant 128 : index
    %1 = vector.load %arg4[%c0_1, %c128] : memref<1x384xf32, #tpu.memory_space<vmem>>, vector<1x128xf32>
    %c0_2 = arith.constant 0 : index
    %c256 = arith.constant 256 : index
    %2 = vector.load %arg4[%c0_2, %c256] : memref<1x384xf32, #tpu.memory_space<vmem>>, vector<1x128xf32>
    %c0_3 = arith.constant 0 : index
    %c0_4 = arith.constant 0 : index
    %3 = vector.load %arg1[%c0_3, %c0_4] : memref<8x64xf32, #tpu.memory_space<vmem>>, vector<8x64xf32>
    %c0_5 = arith.constant 0 : index
    %c0_6 = arith.constant 0 : index
    %4 = vector.load %arg2[%c0_5, %c0_6] : memref<64x128xf32, #tpu.memory_space<vmem>>, vector<64x128xf32>
    %cst = arith.constant dense<0.000000e+00> : vector<8x128xf32>
    %5 = tpu.matmul %3, %4, %cst {dimension_numbers = #tpu.dot_dimension_numbers<[1], [0], [0], [1], [0, 0, 1, 1], [], []>} : vector<8x64xf32>, vector<64x128xf32>, vector<8x128xf32> -> vector<8x128xf32>
    %6 = vector.broadcast %0 : vector<1x128xf32> to vector<8x128xf32>
    %7 = arith.addf %5, %6 : vector<8x128xf32>
    %cst_7 = arith.constant 0.000000e+00 : f32
    %8 = vector.broadcast %cst_7 : f32 to vector<8x128xf32>
    %9 = arith.maximumf %7, %8 : vector<8x128xf32>
    %c0_8 = arith.constant 0 : index
    %c0_9 = arith.constant 0 : index
    %10 = vector.load %arg3[%c0_8, %c0_9] : memref<128x256xf32, #tpu.memory_space<vmem>>, vector<128x128xf32>
    %cst_10 = arith.constant dense<0.000000e+00> : vector<8x128xf32>
    %11 = tpu.matmul %9, %10, %cst_10 {dimension_numbers = #tpu.dot_dimension_numbers<[1], [0], [0], [1], [0, 0, 1, 1], [], []>} : vector<8x128xf32>, vector<128x128xf32>, vector<8x128xf32> -> vector<8x128xf32>
    %12 = vector.broadcast %1 : vector<1x128xf32> to vector<8x128xf32>
    %13 = arith.addf %11, %12 : vector<8x128xf32>
    %14 = arith.negf %13 : vector<8x128xf32>
    %15 = math.exp %14 : vector<8x128xf32>
    %cst_11 = arith.constant 1.000000e+00 : f32
    %16 = vector.broadcast %cst_11 : f32 to vector<8x128xf32>
    %17 = arith.addf %16, %15 : vector<8x128xf32>
    %18 = arith.divf %16, %17 : vector<8x128xf32>
    %c0_12 = arith.constant 0 : index
    %c128_13 = arith.constant 128 : index
    %19 = vector.load %arg3[%c0_12, %c128_13] : memref<128x256xf32, #tpu.memory_space<vmem>>, vector<128x128xf32>
    %cst_14 = arith.constant dense<0.000000e+00> : vector<8x128xf32>
    %20 = tpu.matmul %18, %19, %cst_14 {dimension_numbers = #tpu.dot_dimension_numbers<[1], [0], [0], [1], [0, 0, 1, 1], [], []>} : vector<8x128xf32>, vector<128x128xf32>, vector<8x128xf32> -> vector<8x128xf32>
    %21 = vector.broadcast %2 : vector<1x128xf32> to vector<8x128xf32>
    %22 = arith.addf %20, %21 : vector<8x128xf32>
    %23 = vector.extract_strided_slice %22 {offsets = [0, 0], sizes = [8, 2], strides = [1, 1]} : vector<8x128xf32> to vector<8x2xf32>
    %c0_15 = arith.constant 0 : index
    %c0_16 = arith.constant 0 : index
    %24 = vector.load %arg5[%c0_15, %c0_16] : memref<8x2xf32, #tpu.memory_space<vmem>>, vector<8x2xf32>
    tpu.vector_store %arg5[%c0_15, %c0_16], %23 {strides = array<i32>} : memref<8x2xf32, #tpu.memory_space<vmem>>, vector<8x2xf32>,
    return
  }
  func.func @transform_0(%arg0: i32) -> (i32, i32) {
    %c0_i32 = arith.constant 0 : i32
    %c0_i32_0 = arith.constant 0 : i32
    return %arg0, %c0_i32 : i32, i32
  }
  func.func @transform_1(%arg0: i32) -> (i32, i32) {
    %c0_i32 = arith.constant 0 : i32
    %c0_i32_0 = arith.constant 0 : i32
    %c0_i32_1 = arith.constant 0 : i32
    return %c0_i32, %c0_i32_0 : i32, i32
  }
  func.func @transform_2(%arg0: i32) -> (i32, i32) {
    %c0_i32 = arith.constant 0 : i32
    %c0_i32_0 = arith.constant 0 : i32
    %c0_i32_1 = arith.constant 0 : i32
    return %c0_i32, %c0_i32_0 : i32, i32
  }
  func.func @transform_3(%arg0: i32) -> (i32, i32) {
    %c0_i32 = arith.constant 0 : i32
    %c0_i32_0 = arith.constant 0 : i32
    %c0_i32_1 = arith.constant 0 : i32
    return %c0_i32, %c0_i32_0 : i32, i32
  }
  func.func @transform_4(%arg0: i32) -> (i32, i32) {
    %c0_i32 = arith.constant 0 : i32
    %c0_i32_0 = arith.constant 0 : i32
    return %arg0, %c0_i32 : i32, i32
  }
}

</mosaic_0001>

<llo_original>
// kernel: mlp_forward.1
$region0: #{mlp_forward.1}
  #allocation0 [shape = 'u32[]', space=smem, size = 0x4, offset = 0x4, fixed_abs, tag = 'smem constant byte address 0x4 - core index']
  #allocation1 [shape = 'u32[144,128]{1,0:T(1,128)}', space=vmem, size = 0x12000, scoped, tag = 'internal scratch']
  %s0 = inlined_call_operand.hbm [shape: f32[8,64], index: 0, kind: input, shape index: {}]
  %s1 = inlined_call_operand.hbm [shape: f32[64,128], index: 1, kind: input, shape index: {}]
  %s2 = inlined_call_operand.hbm [shape: f32[128,256], index: 2, kind: input, shape index: {}]
  %s3 = inlined_call_operand.vmem [shape: f32[1,384], index: 3, kind: input, shape index: {}]
  %s4 = inlined_call_operand.vmem [shape: f32[8,2], index: 4, kind: output, shape index: {}]
  %s5 = sld [smem:[#allocation0]]
  $region38: #{mlp_forward.1} parent=0
    _
  %s7 = ssub.s32 1, %s5
  %s8 = scalar_select 0, %s7, %s5
  $region1: #{mlp_forward.1} parent=0
    #allocation2 [shape = 'u8[4096]{0}', space=vmem, size = 0x1000, scoped, tag = 'input window, operand 0, single buffered']
    #allocation3 [shape = 's32[1]{0}', space=sflag, size = 0x4, scoped, tag = 'scoped memory for mlp_forward.1']
    #allocation4 [shape = 'u8[32768]{0}', space=vmem, size = 0x8000, scoped, tag = 'input window, operand 1, single buffered']
    #allocation5 [shape = 's32[1]{0}', space=sflag, size = 0x4, scoped, tag = 'scoped memory for mlp_forward.1']
    #allocation6 [shape = 'u8[131072]{0}', space=vmem, size = 0x20000, scoped, tag = 'input window, operand 2, single buffered']
    %9 = vsyncpa [#allocation3], 0
    %10 = vsyncpa [#allocation5], 0
    // Predicated region
    $region2: #{mlp_forward.1} parent=1 // pred_check
      _
    $region3: #{mlp_forward.1} parent=1 // pred_check_branch
      %12 = sbr.rel (0) target = $region5
    $region4: #{mlp_forward.1} parent=1 // pred_region
      %s14 = ssub.s32 128, 128
      %15 = vsyncadd [#allocation3], %s14
      %s17 = sshll.u32 [#allocation2], 4
      %s18 = int_to_ptr.vmem [resolvable:$true] %s17
      %20 = dma.hbm_to_vmem [thread:$0]  %s0, 128, %s18, [#allocation3]
    $region5: #{mlp_forward.1} parent=1 // pred_fallthru
      _
    // Predicated region
    $region6: #{mlp_forward.1} parent=1 // pred_check
      _
    $region7: #{mlp_forward.1} parent=1 // pred_check_branch
      %22 = sbr.rel (0) target = $region9
    $region8: #{mlp_forward.1} parent=1 // pred_region
      %s24 = ssub.s32 1024, 1024
      %25 = vsyncadd [#allocation5], %s24
      %s26 = sshll.u32 [#allocation4], 4
      %s27 = int_to_ptr.vmem [resolvable:$true] %s26
      %32 = dma.hbm_to_vmem [thread:$0]  %s1, 1024, %s27, [#allocation5], 128, 128, 8
    $region9: #{mlp_forward.1} parent=1 // pred_fallthru
      _
    // Predicated region
    $region10: #{mlp_forward.1} parent=1 // pred_check
      _
    $region11: #{mlp_forward.1} parent=1 // pred_check_branch
      %34 = sbr.rel (0) target = $region13
    $region12: #{mlp_forward.1} parent=1 // pred_region
      %s36 = ssub.s32 4096, 4096
      %37 = vsyncadd [#allocation5], %s36
      %s38 = sshll.u32 [#allocation6], 4
      %s39 = int_to_ptr.vmem [resolvable:$true] %s38
      %44 = dma.hbm_to_vmem [thread:$0]  %s2, 4096, %s39, [#allocation5], 256, 256, 16
    $region13: #{mlp_forward.1} parent=1 // pred_fallthru
      _
    // Predicated region
    $region14: #{mlp_forward.1} parent=1 // pred_check
      _
    $region15: #{mlp_forward.1} parent=1 // pred_check_branch
      %46 = sbr.rel (0) target = $region17
    $region16: #{mlp_forward.1} parent=1 // pred_region
      _
    $region17: #{mlp_forward.1} parent=1 // pred_fallthru
      _
    // Predicated region
    $region18: #{mlp_forward.1} parent=1 // pred_check
      _
    $region19: #{mlp_forward.1} parent=1 // pred_check_branch
      %48 = sbr.rel (0) target = $region21
    $region20: #{mlp_forward.1} parent=1 // pred_region
      %49 = dma.done [#allocation3], 128
    $region21: #{mlp_forward.1} parent=1 // pred_fallthru
      _
    // Predicated region
    $region22: #{mlp_forward.1} parent=1 // pred_check
      _
    $region23: #{mlp_forward.1} parent=1 // pred_check_branch
      %51 = sbr.rel (0) target = $region25
    $region24: #{mlp_forward.1} parent=1 // pred_region
      %52 = dma.done [#allocation5], 1024
    $region25: #{mlp_forward.1} parent=1 // pred_fallthru
      _
    // Predicated region
    $region26: #{mlp_forward.1} parent=1 // pred_check
      _
    $region27: #{mlp_forward.1} parent=1 // pred_check_branch
      %54 = sbr.rel (0) target = $region29
    $region28: #{mlp_forward.1} parent=1 // pred_region
      %55 = dma.done [#allocation5], 4096
    $region29: #{mlp_forward.1} parent=1 // pred_fallthru
      _
    %v56 = vld [vmem:[%s3] sm:$0x1]
    %v57 = vld [vmem:[%s3 + $0x1] sm:$0x1]
    %v58 = vld [vmem:[%s3 + $0x2] sm:$0x1]
    %v59 = vld [vmem:[#allocation2] sm:$0xff]
    %v60 = vld [vmem:[#allocation4] sm:$0xff]
    %v61 = vld [vmem:[#allocation4 + $0x8] sm:$0xff]
    %v62 = vld [vmem:[#allocation4 + $0x10] sm:$0xff]
    %v63 = vld [vmem:[#allocation4 + $0x18] sm:$0xff]
    %v64 = vld [vmem:[#allocation4 + $0x20] sm:$0xff]
    %v65 = vld [vmem:[#allocation4 + $0x28] sm:$0xff]
    %v66 = vld [vmem:[#allocation4 + $0x30] sm:$0xff]
    %v67 = vld [vmem:[#allocation4 + $0x38] sm:$0xff]
    %v69 = vlaneseq
    %v70 = vshrl.u32 %v69, 7
    %v71 = vsub.s32 0, %v70
    %v72 = vrot.slane %v56, %v71
    %vm74 = vcmask 523264
    %v76 = vsel %vm74, %v59, 0
    %78 = vmatprep.subr.mxu0 0.0
    %79 = vmatpush1.msra.mxu0 0.0
    %80 = vmatprep.subr.mxu0 0.0
    %81 = vmatpush1.msra.mxu0 0.0
    %82 = vmatprep.subr.mxu0 0.0
    %83 = vmatpush1.msra.mxu0 0.0
    %84 = vmatprep.subr.mxu0 0.0
    %85 = vmatpush1.msra.mxu0 0.0
    %86 = vmatprep.subr.mxu0 0.0
    %87 = vmatpush1.msra.mxu0 0.0
    %88 = vmatprep.subr.mxu0 0.0
    %89 = vmatpush1.msra.mxu0 0.0
    %90 = vmatprep.subr.mxu0 0.0
    %91 = vmatpush1.msra.mxu0 0.0
    %92 = vmatprep.subr.mxu0 0.0
    %93 = vmatpush1.msra.mxu0 0.0
    %94 = vmatprep.subr.mxu0 0.0
    %95 = vmatpush1.msra.mxu0 %v67
    %96 = vmatprep.subr.mxu0 0.0
    %97 = vmatpush1.msra.mxu0 %v66
    %98 = vmatprep.subr.mxu0 0.0
    %99 = vmatpush1.msra.mxu0 %v65
    %100 = vmatprep.subr.mxu0 0.0
    %101 = vmatpush1.msra.mxu0 %v64
    %102 = vmatprep.subr.mxu0 0.0
    %103 = vmatpush1.msra.mxu0 %v63
    %104 = vmatprep.subr.mxu0 0.0
    %105 = vmatpush1.msra.mxu0 %v62
    %106 = vmatprep.subr.mxu0 0.0
    %107 = vmatpush1.msra.mxu0 %v61
    %108 = vmatprep.subr.mxu0 0.0
    %109 = vmatpush1.msra.mxu0 %v60
    %110 = vmatprep.subr.mxu0 0.0
    %111 = vmatpush2.msra.mxu0 0.0
    %112 = vmatprep.subr.mxu0 0.0
    %113 = vmatpush2.msra.mxu0 0.0
    %114 = vmatprep.subr.mxu0 0.0
    %115 = vmatpush2.msra.mxu0 0.0
    %116 = vmatprep.subr.mxu0 0.0
    %117 = vmatpush2.msra.mxu0 0.0
    %118 = vmatprep.subr.mxu0 0.0
    %119 = vmatpush2.msra.mxu0 0.0
    %120 = vmatprep.subr.mxu0 0.0
    %121 = vmatpush2.msra.mxu0 0.0
    %122 = vmatprep.subr.mxu0 0.0
    %123 = vmatpush2.msra.mxu0 0.0
    %124 = vmatprep.subr.mxu0 0.0
    %125 = vmatpush2.msra.mxu0 0.0
    %126 = vmatprep.subr.mxu0 0.0
    %127 = vmatpush2.msra.mxu0 0.0
    %128 = vmatprep.subr.mxu0 0.0
    %129 = vmatpush2.msra.mxu0 0.0
    %130 = vmatprep.subr.mxu0 0.0
    %131 = vmatpush2.msra.mxu0 0.0
    %132 = vmatprep.subr.mxu0 0.0
    %133 = vmatpush2.msra.mxu0 0.0
    %134 = vmatprep.subr.mxu0 0.0
    %135 = vmatpush2.msra.mxu0 0.0
    %136 = vmatprep.subr.mxu0 0.0
    %137 = vmatpush2.msra.mxu0 0.0
    %138 = vmatprep.subr.mxu0 0.0
    %139 = vmatpush2.msra.mxu0 0.0
    %140 = vmatprep.subr.mxu0 0.0
    %141 = vmatpush2.msra.mxu0 0.0
    %142 = vmatprep.mubr.f32.mxu0 0.0
    %143 = vmatmul.mubr.f32.gmra.mxu0 %v76
    %v144 = vpop.f32.mrf.mxu0
    %v145 = vadd.f32 %v72, %v144
    %v146 = vpop.f32.mrf.mxu0
    %147 = vdwg.mxu0
    %v148 = vmax.f32 %v145, 0.0
    %v149 = vld [vmem:[#allocation6] sm:$0xff]
    %v150 = vld [vmem:[#allocation6 + $0x10] sm:$0xff]
    %v151 = vld [vmem:[#allocation6 + $0x20] sm:$0xff]
    %v152 = vld [vmem:[#allocation6 + $0x30] sm:$0xff]
    %v153 = vld [vmem:[#allocation6 + $0x40] sm:$0xff]
    %v154 = vld [vmem:[#allocation6 + $0x50] sm:$0xff]
    %v155 = vld [vmem:[#allocation6 + $0x60] sm:$0xff]
    %v156 = vld [vmem:[#allocation6 + $0x70] sm:$0xff]
    %v157 = vld [vmem:[#allocation6 + $0x80] sm:$0xff]
    %v158 = vld [vmem:[#allocation6 + $0x90] sm:$0xff]
    %v159 = vld [vmem:[#allocation6 + $0xa0] sm:$0xff]
    %v160 = vld [vmem:[#allocation6 + $0xb0] sm:$0xff]
    %v161 = vld [vmem:[#allocation6 + $0xc0] sm:$0xff]
    %v162 = vld [vmem:[#allocation6 + $0xd0] sm:$0xff]
    %v163 = vld [vmem:[#allocation6 + $0xe0] sm:$0xff]
    %v164 = vld [vmem:[#allocation6 + $0xf0] sm:$0xff]
    %v166 = vlaneseq
    %v167 = vshrl.u32 %v166, 7
    %v168 = vsub.s32 0, %v167
    %v169 = vrot.slane %v57, %v168
    %171 = vmatprep.subr.mxu0 0.0
    %172 = vmatpush1.msra.mxu0 %v164
    %173 = vmatprep.subr.mxu0 0.0
    %174 = vmatpush1.msra.mxu0 %v163
    %175 = vmatprep.subr.mxu0 0.0
    %176 = vmatpush1.msra.mxu0 %v162
    %177 = vmatprep.subr.mxu0 0.0
    %178 = vmatpush1.msra.mxu0 %v161
    %179 = vmatprep.subr.mxu0 0.0
    %180 = vmatpush1.msra.mxu0 %v160
    %181 = vmatprep.subr.mxu0 0.0
    %182 = vmatpush1.msra.mxu0 %v159
    %183 = vmatprep.subr.mxu0 0.0
    %184 = vmatpush1.msra.mxu0 %v158
    %185 = vmatprep.subr.mxu0 0.0
    %186 = vmatpush1.msra.mxu0 %v157
    %187 = vmatprep.subr.mxu0 0.0
    %188 = vmatpush1.msra.mxu0 %v156
    %189 = vmatprep.subr.mxu0 0.0
    %190 = vmatpush1.msra.mxu0 %v155
    %191 = vmatprep.subr.mxu0 0.0
    %192 = vmatpush1.msra.mxu0 %v154
    %193 = vmatprep.subr.mxu0 0.0
    %194 = vmatpush1.msra.mxu0 %v153
    %195 = vmatprep.subr.mxu0 0.0
    %196 = vmatpush1.msra.mxu0 %v152
    %197 = vmatprep.subr.mxu0 0.0
    %198 = vmatpush1.msra.mxu0 %v151
    %199 = vmatprep.subr.mxu0 0.0
    %200 = vmatpush1.msra.mxu0 %v150
    %201 = vmatprep.subr.mxu0 0.0
    %202 = vmatpush1.msra.mxu0 %v149
    %203 = vmatprep.subr.mxu0 0.0
    %204 = vmatpush2.msra.mxu0 0.0
    %205 = vmatprep.subr.mxu0 0.0
    %206 = vmatpush2.msra.mxu0 0.0
    %207 = vmatprep.subr.mxu0 0.0
    %208 = vmatpush2.msra.mxu0 0.0
    %209 = vmatprep.subr.mxu0 0.0
    %210 = vmatpush2.msra.mxu0 0.0
    %211 = vmatprep.subr.mxu0 0.0
    %212 = vmatpush2.msra.mxu0 0.0
    %213 = vmatprep.subr.mxu0 0.0
    %214 = vmatpush2.msra.mxu0 0.0
    %215 = vmatprep.subr.mxu0 0.0
    %216 = vmatpush2.msra.mxu0 0.0
    %217 = vmatprep.subr.mxu0 0.0
    %218 = vmatpush2.msra.mxu0 0.0
    %219 = vmatprep.subr.mxu0 0.0
    %220 = vmatpush2.msra.mxu0 0.0
    %221 = vmatprep.subr.mxu0 0.0
    %222 = vmatpush2.msra.mxu0 0.0
    %223 = vmatprep.subr.mxu0 0.0
    %224 = vmatpush2.msra.mxu0 0.0
    %225 = vmatprep.subr.mxu0 0.0
    %226 = vmatpush2.msra.mxu0 0.0
    %227 = vmatprep.subr.mxu0 0.0
    %228 = vmatpush2.msra.mxu0 0.0
    %229 = vmatprep.subr.mxu0 0.0
    %230 = vmatpush2.msra.mxu0 0.0
    %231 = vmatprep.subr.mxu0 0.0
    %232 = vmatpush2.msra.mxu0 0.0
    %233 = vmatprep.subr.mxu0 0.0
    %234 = vmatpush2.msra.mxu0 0.0
    %235 = vmatprep.mubr.f32.mxu0 0.0
    %236 = vmatmul.mubr.f32.gmra.mxu0 %v148
    %v237 = vpop.f32.mrf.mxu0
    %v238 = vadd.f32 %v169, %v237
    %v239 = vpop.f32.mrf.mxu0
    %240 = vdwg.mxu0
    %v241 = vxor.u32 %v238, 2147483648
    %v242 = vmul.f32 %v241, 1.442695
    %v243 = vpow.pop %v242
    %v244 = vadd.f32 %v243, 1.0
    %v245 = vrcp.pop %v244
    %v246 = vmul.f32 1.0, %v245
    %v247 = vld [vmem:[#allocation6 + $0x8] sm:$0xff]
    %v248 = vld [vmem:[#allocation6 + $0x18] sm:$0xff]
    %v249 = vld [vmem:[#allocation6 + $0x28] sm:$0xff]
    %v250 = vld [vmem:[#allocation6 + $0x38] sm:$0xff]
    %v251 = vld [vmem:[#allocation6 + $0x48] sm:$0xff]
    %v252 = vld [vmem:[#allocation6 + $0x58] sm:$0xff]
    %v253 = vld [vmem:[#allocation6 + $0x68] sm:$0xff]
    %v254 = vld [vmem:[#allocation6 + $0x78] sm:$0xff]
    %v255 = vld [vmem:[#allocation6 + $0x88] sm:$0xff]
    %v256 = vld [vmem:[#allocation6 + $0x98] sm:$0xff]
    %v257 = vld [vmem:[#allocation6 + $0xa8] sm:$0xff]
    %v258 = vld [vmem:[#allocation6 + $0xb8] sm:$0xff]
    %v259 = vld [vmem:[#allocation6 + $0xc8] sm:$0xff]
    %v260 = vld [vmem:[#allocation6 + $0xd8] sm:$0xff]
    %v261 = vld [vmem:[#allocation6 + $0xe8] sm:$0xff]
    %v262 = vld [vmem:[#allocation6 + $0xf8] sm:$0xff]
    %v264 = vlaneseq
    %v265 = vshrl.u32 %v264, 7
    %v266 = vsub.s32 0, %v265
    %v267 = vrot.slane %v58, %v266
    %269 = vmatprep.subr.mxu0 0.0
    %270 = vmatpush1.msra.mxu0 %v262
    %271 = vmatprep.subr.mxu0 0.0
    %272 = vmatpush1.msra.mxu0 %v261
    %273 = vmatprep.subr.mxu0 0.0
    %274 = vmatpush1.msra.mxu0 %v260
    %275 = vmatprep.subr.mxu0 0.0
    %276 = vmatpush1.msra.mxu0 %v259
    %277 = vmatprep.subr.mxu0 0.0
    %278 = vmatpush1.msra.mxu0 %v258
    %279 = vmatprep.subr.mxu0 0.0
    %280 = vmatpush1.msra.mxu0 %v257
    %281 = vmatprep.subr.mxu0 0.0
    %282 = vmatpush1.msra.mxu0 %v256
    %283 = vmatprep.subr.mxu0 0.0
    %284 = vmatpush1.msra.mxu0 %v255
    %285 = vmatprep.subr.mxu0 0.0
    %286 = vmatpush1.msra.mxu0 %v254
    %287 = vmatprep.subr.mxu0 0.0
    %288 = vmatpush1.msra.mxu0 %v253
    %289 = vmatprep.subr.mxu0 0.0
    %290 = vmatpush1.msra.mxu0 %v252
    %291 = vmatprep.subr.mxu0 0.0
    %292 = vmatpush1.msra.mxu0 %v251
    %293 = vmatprep.subr.mxu0 0.0
    %294 = vmatpush1.msra.mxu0 %v250
    %295 = vmatprep.subr.mxu0 0.0
    %296 = vmatpush1.msra.mxu0 %v249
    %297 = vmatprep.subr.mxu0 0.0
    %298 = vmatpush1.msra.mxu0 %v248
    %299 = vmatprep.subr.mxu0 0.0
    %300 = vmatpush1.msra.mxu0 %v247
    %301 = vmatprep.subr.mxu0 0.0
    %302 = vmatpush2.msra.mxu0 0.0
    %303 = vmatprep.subr.mxu0 0.0
    %304 = vmatpush2.msra.mxu0 0.0
    %305 = vmatprep.subr.mxu0 0.0
    %306 = vmatpush2.msra.mxu0 0.0
    %307 = vmatprep.subr.mxu0 0.0
    %308 = vmatpush2.msra.mxu0 0.0
    %309 = vmatprep.subr.mxu0 0.0
    %310 = vmatpush2.msra.mxu0 0.0
    %311 = vmatprep.subr.mxu0 0.0
    %312 = vmatpush2.msra.mxu0 0.0
    %313 = vmatprep.subr.mxu0 0.0
    %314 = vmatpush2.msra.mxu0 0.0
    %315 = vmatprep.subr.mxu0 0.0
    %316 = vmatpush2.msra.mxu0 0.0
    %317 = vmatprep.subr.mxu0 0.0
    %318 = vmatpush2.msra.mxu0 0.0
    %319 = vmatprep.subr.mxu0 0.0
    %320 = vmatpush2.msra.mxu0 0.0
    %321 = vmatprep.subr.mxu0 0.0
    %322 = vmatpush2.msra.mxu0 0.0
    %323 = vmatprep.subr.mxu0 0.0
    %324 = vmatpush2.msra.mxu0 0.0
    %325 = vmatprep.subr.mxu0 0.0
    %326 = vmatpush2.msra.mxu0 0.0
    %327 = vmatprep.subr.mxu0 0.0
    %328 = vmatpush2.msra.mxu0 0.0
    %329 = vmatprep.subr.mxu0 0.0
    %330 = vmatpush2.msra.mxu0 0.0
    %331 = vmatprep.subr.mxu0 0.0
    %332 = vmatpush2.msra.mxu0 0.0
    %333 = vmatprep.mubr.f32.mxu0 0.0
    %334 = vmatmul.mubr.f32.gmra.mxu0 %v246
    %v335 = vpop.f32.mrf.mxu0
    %v336 = vadd.f32 %v267, %v335
    %v337 = vpop.f32.mrf.mxu0
    %338 = vdwg.mxu0
    %vm339 = vcmask 15360
    %340 = vst.msk [vmem:[%s4] sm:$0xff] %vm339, %v336
    // Predicated region
    $region30: #{mlp_forward.1} parent=1 // pred_check
      _
    $region31: #{mlp_forward.1} parent=1 // pred_check_branch
      %342 = sbr.rel (0) target = $region33
    $region32: #{mlp_forward.1} parent=1 // pred_region
      _
    $region33: #{mlp_forward.1} parent=1 // pred_fallthru
      _
    // Predicated region
    $region34: #{mlp_forward.1} parent=1 // pred_check
      _
    $region35: #{mlp_forward.1} parent=1 // pred_check_branch
      %344 = sbr.rel (0) target = $region37
    $region36: #{mlp_forward.1} parent=1 // pred_region
      _
    $region37: #{mlp_forward.1} parent=1 // pred_fallthru
      _
    %345 = vsyncpa [#allocation3], 1
    %346 = vsyncpa [#allocation5], 1

</llo_original>
